<compile_context>
chip_gen: v7x
topology: tpu7x:2x2x1
jax: 0.10.0
libtpu: 0.0.40
codegen_flags: <defaults>
</compile_context>

<pallas_src>
import jax
import jax.numpy as jnp
from jax.experimental import pallas as pl
from jax.experimental.pallas import tpu as pltpu

AUG_DIMS = 8
ODE_STEPS = 16


# --------------------------------------------------------------------------
# Pallas kernel: one packed row tile -> relu(x @ W1_blk + b1) @ Wf_blk + bf
# --------------------------------------------------------------------------
def s_anode_kernel(x_ref, w1_ref, b1_ref, wf_ref, bf_ref, out_ref):
    h = jnp.dot(x_ref[...], w1_ref[...], preferred_element_type=jnp.float32)
    h = jnp.maximum(h + b1_ref[...], 0.0)
    out = jnp.dot(h, wf_ref[...], preferred_element_type=jnp.float32) + bf_ref[...]
    out_ref[...] = out.astype(out_ref.dtype)


# --------------------------------------------------------------------------
# Wrapper-side algebra on tiny (D,D) matrices (D = num_features + 8 = 24).
# --------------------------------------------------------------------------
def _collapse_to_affine(w_ode, b_ode, w_pen, b_pen, num_features,
                        steps=ODE_STEPS):
    """Collapse RK4(affine ODE) + skip + penultimate into (W1, b1)."""
    D = w_ode.shape[0]
    Mm = w_ode.T.astype(jnp.float32)                       # z -> z @ Mm + b
    b = b_ode.reshape(1, D).astype(jnp.float32)
    dt = 1.0 / steps
    I = jnp.eye(D, dtype=jnp.float32)
    M2 = Mm @ Mm
    M3 = M2 @ Mm
    M4 = M3 @ Mm
    # One RK4 step: z -> z @ P + q  (exact for an affine field)
    P = I + dt * Mm + (dt ** 2 / 2.0) * M2 + (dt ** 3 / 6.0) * M3 \
        + (dt ** 4 / 24.0) * M4
    q = b @ (dt * I + (dt ** 2 / 2.0) * Mm + (dt ** 3 / 6.0) * M2
             + (dt ** 4 / 24.0) * M3)
    # Compose all steps: z_{n+1} = z_n @ P + q  (16 tiny matmuls, trace time)
    A = I
    c = jnp.zeros((1, D), jnp.float32)
    for _ in range(steps):
        c = c @ P + q
        A = A @ P
    A_skip = A + I                                         # z(1) + z0 skip
    W1 = A_skip @ w_pen.T.astype(jnp.float32)              # (D, H)
    b1 = c @ w_pen.T.astype(jnp.float32) + b_pen.reshape(1, -1).astype(jnp.float32)
    # Augmented dims of z0 are zero => only the first num_features rows of W1
    # contribute, so the zero-augmentation never needs to be materialized.
    return W1[:num_features, :], b1


def s_anode_linear_forward(x, params, *, tile_rows=32768, pack_g=8):
    """x: (B, T, num_features) -> (B, T, num_classes).

    pack_g: rows packed per lane-row (8 -> K=128; use 16 on v6e/v7x for K=256).
    tile_rows: row tile size in *original* rows.
    """
    (w_ode, b_ode), (w_pen, b_pen), (w_fin, b_fin) = params
    B, T, F = x.shape
    H = w_pen.shape[0]
    C = w_fin.shape[0]
    M = B * T
    g = pack_g

    W1, b1 = _collapse_to_affine(w_ode, b_ode, w_pen, b_pen, F)   # (F,H),(1,H)
    Wf = w_fin.T.astype(jnp.float32)                              # (H, C)
    bf = b_fin.reshape(1, C).astype(jnp.float32)                  # (1, C)

    # ---- Lane packing: g rows per lane-row, block-diagonal weights --------
    # Block-diagonal copies are exact zeros elsewhere, so the packed matmul
    # is numerically identical to the unpacked one.
    eye_g = jnp.eye(g, dtype=jnp.float32)
    W1_blk = jnp.kron(eye_g, W1)          # (F*g, H*g)
    Wf_blk = jnp.kron(eye_g, Wf)          # (H*g, C*g)
    b1_blk = jnp.tile(b1, (1, g))         # (1, H*g)
    bf_blk = jnp.tile(bf, (1, g))         # (1, C*g)

    # Feed x in its native dtype (f32/bf16 are fine MXU LHS inputs); only
    # up-cast exotic dtypes.  Row-major reshape to packed rows is free.
    if x.dtype not in (jnp.float32, jnp.bfloat16):
        x = x.astype(jnp.float32)
    x2d = x.reshape(M, F)
    pad = (-M) % g
    if pad:
        x2d = jnp.pad(x2d, ((0, pad), (0, 0)))
    Mpad = M + pad
    Mp = Mpad // g
    xp = x2d.reshape(Mp, F * g)

    # ---- Row tile in packed rows ------------------------------------------
    # Big tiles amortize the ~0.35us/step grid overhead.  Cap so the grid
    # keeps >= 8 steps (both v7x TCs fed, pipeline full).  VMEM at 4096
    # packed rows: (4096*128 + 4096*48)*4 B * 2 buffers ~= 5.5 MiB + ~0.5 MiB
    # of weights -> far below the 16 MiB (v5e) / 32 MiB (v6e/v7x) scoped
    # defaults and v7x's 64 MiB physical VMEM, so no vmem_limit_bytes needed.
    tile_mp = max(1, tile_rows // g)
    if tile_mp >= Mp:
        tile_mp = Mp                                   # single full-extent block
    else:
        tile_mp = min(tile_mp, pl.cdiv(Mp, 8))         # keep >= 8 grid steps
        tile_mp = max(8, (tile_mp // 8) * 8)           # sublane multiple of 8
        tile_mp = min(tile_mp, Mp)
    grid = (pl.cdiv(Mp, tile_mp),)

    cost = pl.CostEstimate(
        flops=2 * Mp * (F * g * H * g + H * g * C * g),
        bytes_accessed=4 * (Mp * F * g + Mp * C * g + F * g * H * g
                            + H * g + H * g * C * g + C * g),
        transcendentals=0,
    )

    outp = pl.pallas_call(
        s_anode_kernel,
        out_shape=jax.ShapeDtypeStruct((Mp, C * g), jnp.float32),
        grid=grid,
        in_specs=[
            pl.BlockSpec((tile_mp, F * g), lambda i: (i, 0)),  # packed x rows
            pl.BlockSpec((F * g, H * g), lambda i: (0, 0)),    # fused ODE+skip+pen
            pl.BlockSpec((1, H * g), lambda i: (0, 0)),
            pl.BlockSpec((H * g, C * g), lambda i: (0, 0)),    # final weight
            pl.BlockSpec((1, C * g), lambda i: (0, 0)),
        ],
        out_specs=pl.BlockSpec((tile_mp, C * g), lambda i: (i, 0)),
        compiler_params=pltpu.CompilerParams(
            dimension_semantics=("parallel",)),                # megacore / v7x 2-TC
        cost_estimate=cost,
    )(xp, W1_blk, b1_blk, Wf_blk, bf_blk)

    # (Mp, C*g) flattens bit-identically to (Mpad, C); drop pad rows.
    out2d = outp.reshape(Mpad, C)[:M]
    return out2d.reshape(B, T, C)


# --------------------------------------------------------------------------
# Reference (pure JAX, explicit RK4 loop) + deterministic init
# --------------------------------------------------------------------------
def init_linear(key, in_f, out_f):
    """PyTorch-style nn.Linear init (uniform +-1/sqrt(fan_in)), deterministic."""
    k_w, k_b = jax.random.split(key)
    bound = 1.0 / jnp.sqrt(jnp.float32(in_f))
    w = jax.random.uniform(k_w, (out_f, in_f), jnp.float32, -bound, bound)
    b = jax.random.uniform(k_b, (out_f,), jnp.float32, -bound, bound)
    return w, b


def reference_forward(x, params):
    (w_ode, b_ode), (w_pen, b_pen), (w_fin, b_fin) = params
    B, T, F = x.shape
    z0 = jnp.concatenate(
        [x.astype(jnp.float32), jnp.zeros((B, T, AUG_DIMS), jnp.float32)], axis=-1)
    Mm = w_ode.T
    dt = 1.0 / ODE_STEPS

    def f(z):
        return z @ Mm + b_ode

    z = z0
    for _ in range(ODE_STEPS):
        k1 = f(z)
        k2 = f(z + 0.5 * dt * k1)
        k3 = f(z + 0.5 * dt * k2)
        k4 = f(z + dt * k3)
        z = z + (dt / 6.0) * (k1 + 2.0 * k2 + 2.0 * k3 + k4)
    z = z + z0
    h = jax.nn.relu(z @ w_pen.T + b_pen)
    return h @ w_fin.T + b_fin


if __name__ == "__main__":
    num_features = 16
    hidden_size = 32
    num_classes = 6
    batch, seq = 2, 8
    D = num_features + AUG_DIMS

    key = jax.random.PRNGKey(0)
    k_x, k_ode, k_pen, k_fin = jax.random.split(key, 4)

    x = jax.random.normal(k_x, (batch, seq, num_features), jnp.float32)
    params = (
        init_linear(k_ode, D, D),                      # self.func (ODE field)
        init_linear(k_pen, D, hidden_size),            # self.penultimate
        init_linear(k_fin, hidden_size, num_classes),  # self.final
    )

    out = s_anode_linear_forward(x, params)
    jax.block_until_ready(out)
    assert out.shape == (batch, seq, num_classes)

    ref = reference_forward(x, params)
    assert jnp.allclose(out, ref, rtol=5e-3, atol=5e-3), \
        "Pallas output diverged from RK4 reference"

    print("KERNEL_OK")
</pallas_src>

<mosaic_0001>
module attributes {stable_mosaic.version = 11 : i64} {
  func.func @s_anode_kernel(%arg0: i32, %arg1: memref<2x128xf32, #tpu.memory_space<vmem>>, %arg2: memref<128x256xf32, #tpu.memory_space<vmem>>, %arg3: memref<1x256xf32, #tpu.memory_space<vmem>>, %arg4: memref<256x48xf32, #tpu.memory_space<vmem>>, %arg5: memref<1x48xf32, #tpu.memory_space<vmem>>, %arg6: memref<2x48xf32, #tpu.memory_space<vmem>>) attributes {dimension_semantics = [#tpu.dimension_semantics<parallel>], iteration_bounds = array<i64: 1>, scalar_prefetch = 0 : i64, scratch_operands = 0 : i64, tpu.core_type = #tpu.core_type<tc>, window_params = [{transform_indices = @transform_0, window_bounds = array<i64: 2, 128>}, {pipeline_mode = #tpu.pipeline_mode<synchronous>, transform_indices = @transform_1, window_bounds = array<i64: 128, 256>}, {pipeline_mode = #tpu.pipeline_mode<synchronous>, transform_indices = @transform_2, window_bounds = array<i64: 1, 256>}, {pipeline_mode = #tpu.pipeline_mode<synchronous>, transform_indices = @transform_3, window_bounds = array<i64: 256, 48>}, {pipeline_mode = #tpu.pipeline_mode<synchronous>, transform_indices = @transform_4, window_bounds = array<i64: 1, 48>}, {transform_indices = @transform_5, window_bounds = array<i64: 2, 48>}]} {
    %c0 = arith.constant 0 : index
    %c0_0 = arith.constant 0 : index
    %0 = vector.load %arg1[%c0, %c0_0] : memref<2x128xf32, #tpu.memory_space<vmem>>, vector<2x128xf32>
    %c0_1 = arith.constant 0 : index
    %c0_2 = arith.constant 0 : index
    %1 = vector.load %arg2[%c0_1, %c0_2] : memref<128x256xf32, #tpu.memory_space<vmem>>, vector<128x256xf32>
    %cst = arith.constant dense<0.000000e+00> : vector<2x256xf32>
    %2 = tpu.matmul %0, %1, %cst {dimension_numbers = #tpu.dot_dimension_numbers<[1], [0], [0], [1], [0, 0, 1, 1], [], []>} : vector<2x128xf32>, vector<128x256xf32>, vector<2x256xf32> -> vector<2x256xf32>
    %c0_3 = arith.constant 0 : index
    %c0_4 = arith.constant 0 : index
    %3 = vector.load %arg3[%c0_3, %c0_4] : memref<1x256xf32, #tpu.memory_space<vmem>>, vector<1x256xf32>
    %4 = vector.broadcast %3 : vector<1x256xf32> to vector<2x256xf32>
    %5 = arith.addf %2, %4 : vector<2x256xf32>
    %cst_5 = arith.constant 0.000000e+00 : f32
    %6 = vector.broadcast %cst_5 : f32 to vector<2x256xf32>
    %7 = arith.maximumf %5, %6 : vector<2x256xf32>
    %c0_6 = arith.constant 0 : index
    %c0_7 = arith.constant 0 : index
    %8 = vector.load %arg4[%c0_6, %c0_7] : memref<256x48xf32, #tpu.memory_space<vmem>>, vector<256x48xf32>
    %cst_8 = arith.constant dense<0.000000e+00> : vector<2x48xf32>
    %9 = tpu.matmul %7, %8, %cst_8 {dimension_numbers = #tpu.dot_dimension_numbers<[1], [0], [0], [1], [0, 0, 1, 1], [], []>} : vector<2x256xf32>, vector<256x48xf32>, vector<2x48xf32> -> vector<2x48xf32>
    %c0_9 = arith.constant 0 : index
    %c0_10 = arith.constant 0 : index
    %10 = vector.load %arg5[%c0_9, %c0_10] : memref<1x48xf32, #tpu.memory_space<vmem>>, vector<1x48xf32>
    %11 = vector.broadcast %10 : vector<1x48xf32> to vector<2x48xf32>
    %12 = arith.addf %9, %11 : vector<2x48xf32>
    %c0_11 = arith.constant 0 : index
    %c0_12 = arith.constant 0 : index
    %13 = vector.load %arg6[%c0_11, %c0_12] : memref<2x48xf32, #tpu.memory_space<vmem>>, vector<2x48xf32>
    tpu.vector_store %arg6[%c0_11, %c0_12], %12 {strides = array<i32>} : memref<2x48xf32, #tpu.memory_space<vmem>>, vector<2x48xf32>,
    return
  }
  func.func @transform_0(%arg0: i32) -> (i32, i32) {
    %c0_i32 = arith.constant 0 : i32
    %c0_i32_0 = arith.constant 0 : i32
    return %arg0, %c0_i32 : i32, i32
  }
  func.func @transform_1(%arg0: i32) -> (i32, i32) {
    %c0_i32 = arith.constant 0 : i32
    %c0_i32_0 = arith.constant 0 : i32
    %c0_i32_1 = arith.constant 0 : i32
    return %c0_i32, %c0_i32_0 : i32, i32
  }
  func.func @transform_2(%arg0: i32) -> (i32, i32) {
    %c0_i32 = arith.constant 0 : i32
    %c0_i32_0 = arith.constant 0 : i32
    %c0_i32_1 = arith.constant 0 : i32
    return %c0_i32, %c0_i32_0 : i32, i32
  }
  func.func @transform_3(%arg0: i32) -> (i32, i32) {
    %c0_i32 = arith.constant 0 : i32
    %c0_i32_0 = arith.constant 0 : i32
    %c0_i32_1 = arith.constant 0 : i32
    return %c0_i32, %c0_i32_0 : i32, i32
  }
  func.func @transform_4(%arg0: i32) -> (i32, i32) {
    %c0_i32 = arith.constant 0 : i32
    %c0_i32_0 = arith.constant 0 : i32
    %c0_i32_1 = arith.constant 0 : i32
    return %c0_i32, %c0_i32_0 : i32, i32
  }
  func.func @transform_5(%arg0: i32) -> (i32, i32) {
    %c0_i32 = arith.constant 0 : i32
    %c0_i32_0 = arith.constant 0 : i32
    return %arg0, %c0_i32 : i32, i32
  }
}

</mosaic_0001>

<llo_original>
// kernel: tpu_custom_call.1
$region0: #{tpu_custom_call.1}
  #allocation0 [shape = 'u32[]', space=smem, size = 0x4, offset = 0x4, fixed_abs, tag = 'smem constant byte address 0x4 - core index']
  #allocation1 [shape = 'u32[144,128]{1,0:T(1,128)}', space=vmem, size = 0x12000, scoped, tag = 'internal scratch']
  %s0 = inlined_call_operand.vmem [shape: f32[2,128], index: 0, kind: input, shape index: {}]
  %s1 = inlined_call_operand.vmem [shape: f32[128,256], index: 1, kind: input, shape index: {}]
  %s2 = inlined_call_operand.vmem [shape: f32[1,256], index: 2, kind: input, shape index: {}]
  %s3 = inlined_call_operand.vmem [shape: f32[256,48], index: 3, kind: input, shape index: {}]
  %s4 = inlined_call_operand.vmem [shape: f32[1,48], index: 4, kind: input, shape index: {}]
  %s5 = inlined_call_operand.hbm [shape: f32[2,48], index: 5, kind: output, shape index: {}]
  %s6 = sld [smem:[#allocation0]]
  $region30: #{tpu_custom_call.1} parent=0
    _
  %s8 = ssub.s32 1, %s6
  %s9 = scalar_select 0, %s8, %s6
  $region1: #{tpu_custom_call.1} parent=0
    #allocation2 [shape = 'u8[1024]{0}', space=vmem, size = 0x400, scoped, tag = 'output window, operand 0, single buffered']
    #allocation3 [shape = 's32[1]{0}', space=sflag, size = 0x4, scoped, tag = 'scoped memory for tpu_custom_call.1']
    %10 = vsyncpa [#allocation3], 0
    // Predicated region
    $region2: #{tpu_custom_call.1} parent=1 // pred_check
      _
    $region3: #{tpu_custom_call.1} parent=1 // pred_check_branch
      %12 = sbr.rel (0) target = $region5
    $region4: #{tpu_custom_call.1} parent=1 // pred_region
      _
    $region5: #{tpu_custom_call.1} parent=1 // pred_fallthru
      _
    // Predicated region
    $region6: #{tpu_custom_call.1} parent=1 // pred_check
      _
    $region7: #{tpu_custom_call.1} parent=1 // pred_check_branch
      %14 = sbr.rel (0) target = $region9
    $region8: #{tpu_custom_call.1} parent=1 // pred_region
      _
    $region9: #{tpu_custom_call.1} parent=1 // pred_fallthru
      _
    // Predicated region
    $region10: #{tpu_custom_call.1} parent=1 // pred_check
      _
    $region11: #{tpu_custom_call.1} parent=1 // pred_check_branch
      %16 = sbr.rel (0) target = $region13
    $region12: #{tpu_custom_call.1} parent=1 // pred_region
      _
    $region13: #{tpu_custom_call.1} parent=1 // pred_fallthru
      _
    // Predicated region
    $region14: #{tpu_custom_call.1} parent=1 // pred_check
      _
    $region15: #{tpu_custom_call.1} parent=1 // pred_check_branch
      %18 = sbr.rel (0) target = $region17
    $region16: #{tpu_custom_call.1} parent=1 // pred_region
      _
    $region17: #{tpu_custom_call.1} parent=1 // pred_fallthru
      _
    // Predicated region
    $region18: #{tpu_custom_call.1} parent=1 // pred_check
      _
    $region19: #{tpu_custom_call.1} parent=1 // pred_check_branch
      %20 = sbr.rel (0) target = $region21
    $region20: #{tpu_custom_call.1} parent=1 // pred_region
      _
    $region21: #{tpu_custom_call.1} parent=1 // pred_fallthru
      _
    %v21 = vld [vmem:[%s0] sm:$0x3]
    %v22 = vld [vmem:[%s1] sm:$0xff]
    %v23 = vld [vmem:[%s1 + $0x8] sm:$0xff]
    %v24 = vld [vmem:[%s1 + $0x10] sm:$0xff]
    %v25 = vld [vmem:[%s1 + $0x18] sm:$0xff]
    %v26 = vld [vmem:[%s1 + $0x20] sm:$0xff]
    %v27 = vld [vmem:[%s1 + $0x28] sm:$0xff]
    %v28 = vld [vmem:[%s1 + $0x30] sm:$0xff]
    %v29 = vld [vmem:[%s1 + $0x38] sm:$0xff]
    %v30 = vld [vmem:[%s1 + $0x40] sm:$0xff]
    %v31 = vld [vmem:[%s1 + $0x48] sm:$0xff]
    %v32 = vld [vmem:[%s1 + $0x50] sm:$0xff]
    %v33 = vld [vmem:[%s1 + $0x58] sm:$0xff]
    %v34 = vld [vmem:[%s1 + $0x60] sm:$0xff]
    %v35 = vld [vmem:[%s1 + $0x68] sm:$0xff]
    %v36 = vld [vmem:[%s1 + $0x70] sm:$0xff]
    %v37 = vld [vmem:[%s1 + $0x78] sm:$0xff]
    %v38 = vld [vmem:[%s1 + $0x80] sm:$0xff]
    %v39 = vld [vmem:[%s1 + $0x88] sm:$0xff]
    %v40 = vld [vmem:[%s1 + $0x90] sm:$0xff]
    %v41 = vld [vmem:[%s1 + $0x98] sm:$0xff]
    %v42 = vld [vmem:[%s1 + $0xa0] sm:$0xff]
    %v43 = vld [vmem:[%s1 + $0xa8] sm:$0xff]
    %v44 = vld [vmem:[%s1 + $0xb0] sm:$0xff]
    %v45 = vld [vmem:[%s1 + $0xb8] sm:$0xff]
    %v46 = vld [vmem:[%s1 + $0xc0] sm:$0xff]
    %v47 = vld [vmem:[%s1 + $0xc8] sm:$0xff]
    %v48 = vld [vmem:[%s1 + $0xd0] sm:$0xff]
    %v49 = vld [vmem:[%s1 + $0xd8] sm:$0xff]
    %v50 = vld [vmem:[%s1 + $0xe0] sm:$0xff]
    %v51 = vld [vmem:[%s1 + $0xe8] sm:$0xff]
    %v52 = vld [vmem:[%s1 + $0xf0] sm:$0xff]
    %v53 = vld [vmem:[%s1 + $0xf8] sm:$0xff]
    %v54 = vld [vmem:[%s2] sm:$0x3]
    %v56 = vlaneseq
    %v57 = vshrl.u32 %v56, 7
    %v58 = vsub.s32 0, %v57
    %v59 = vrot.slane %v54, %v58
    %v60 = vlaneseq
    %v61 = vshrl.u32 %v60, 7
    %v62 = vsub.s32 1, %v61
    %v63 = vrot.slane %v54, %v62
    %66 = vmatprep.subr.mxu0 %v23
    %67 = vmatpush1.msra.mxu0 %v22
    %68 = vmatprep.subr.mxu0 %v25
    %69 = vmatpush1.msra.mxu0 %v24
    %70 = vmatprep.subr.mxu0 %v27
    %71 = vmatpush1.msra.mxu0 %v26
    %72 = vmatprep.subr.mxu0 %v29
    %73 = vmatpush1.msra.mxu0 %v28
    %74 = vmatprep.subr.mxu0 %v31
    %75 = vmatpush1.msra.mxu0 %v30
    %76 = vmatprep.subr.mxu0 %v33
    %77 = vmatpush1.msra.mxu0 %v32
    %78 = vmatprep.subr.mxu0 %v35
    %79 = vmatpush1.msra.mxu0 %v34
    %80 = vmatprep.subr.mxu0 %v37
    %81 = vmatpush1.msra.mxu0 %v36
    %82 = vmatprep.subr.mxu0 %v39
    %83 = vmatpush1.msra.mxu0 %v38
    %84 = vmatprep.subr.mxu0 %v41
    %85 = vmatpush1.msra.mxu0 %v40
    %86 = vmatprep.subr.mxu0 %v43
    %87 = vmatpush1.msra.mxu0 %v42
    %88 = vmatprep.subr.mxu0 %v45
    %89 = vmatpush1.msra.mxu0 %v44
    %90 = vmatprep.subr.mxu0 %v47
    %91 = vmatpush1.msra.mxu0 %v46
    %92 = vmatprep.subr.mxu0 %v49
    %93 = vmatpush1.msra.mxu0 %v48
    %94 = vmatprep.subr.mxu0 %v51
    %95 = vmatpush1.msra.mxu0 %v50
    %96 = vmatprep.subr.mxu0 %v53
    %97 = vmatpush1.msra.mxu0 %v52
    %98 = vmatprep.subr.mxu0 0.0
    %99 = vmatpush1.msra.mxu0 0.0
    %100 = vmatprep.subr.mxu0 0.0
    %101 = vmatpush1.msra.mxu0 0.0
    %102 = vmatprep.subr.mxu0 0.0
    %103 = vmatpush1.msra.mxu0 0.0
    %104 = vmatprep.subr.mxu0 0.0
    %105 = vmatpush1.msra.mxu0 0.0
    %106 = vmatprep.subr.mxu0 0.0
    %107 = vmatpush1.msra.mxu0 0.0
    %108 = vmatprep.subr.mxu0 0.0
    %109 = vmatpush1.msra.mxu0 0.0
    %110 = vmatprep.subr.mxu0 0.0
    %111 = vmatpush1.msra.mxu0 0.0
    %112 = vmatprep.subr.mxu0 0.0
    %113 = vmatpush1.msra.mxu0 0.0
    %114 = vmatprep.subr.mxu0 0.0
    %115 = vmatpush1.msra.mxu0 0.0
    %116 = vmatprep.subr.mxu0 0.0
    %117 = vmatpush1.msra.mxu0 0.0
    %118 = vmatprep.subr.mxu0 0.0
    %119 = vmatpush1.msra.mxu0 0.0
    %120 = vmatprep.subr.mxu0 0.0
    %121 = vmatpush1.msra.mxu0 0.0
    %122 = vmatprep.subr.mxu0 0.0
    %123 = vmatpush1.msra.mxu0 0.0
    %124 = vmatprep.subr.mxu0 0.0
    %125 = vmatpush1.msra.mxu0 0.0
    %126 = vmatprep.subr.mxu0 0.0
    %127 = vmatpush1.msra.mxu0 0.0
    %128 = vmatprep.subr.mxu0 0.0
    %129 = vmatpush1.msra.mxu0 0.0
    %130 = vmatprep.mubr.f32.mxu0 0.0
    %131 = vmatmul.mubr.f32.gmra.mrb[0].mxu0 %v21
    %v132 = vpop.f32.mrb[0].mxu0
    %v133 = vadd.f32 %v59, %v132
    %v134 = vpop.f32.mrb[0].mxu0
    %v135 = vadd.f32 %v63, %v134
    %136 = vdwg.mxu0
    %v137 = vmax.f32 %v133, 0.0
    %v138 = vmax.f32 %v135, 0.0
    %v139 = vld [vmem:[%s3] sm:$0xff]
    %v140 = vld [vmem:[%s3 + $0x8] sm:$0xff]
    %v141 = vld [vmem:[%s3 + $0x10] sm:$0xff]
    %v142 = vld [vmem:[%s3 + $0x18] sm:$0xff]
    %v143 = vld [vmem:[%s3 + $0x20] sm:$0xff]
    %v144 = vld [vmem:[%s3 + $0x28] sm:$0xff]
    %v145 = vld [vmem:[%s3 + $0x30] sm:$0xff]
    %v146 = vld [vmem:[%s3 + $0x38] sm:$0xff]
    %v147 = vld [vmem:[%s3 + $0x40] sm:$0xff]
    %v148 = vld [vmem:[%s3 + $0x48] sm:$0xff]
    %v149 = vld [vmem:[%s3 + $0x50] sm:$0xff]
    %v150 = vld [vmem:[%s3 + $0x58] sm:$0xff]
    %v151 = vld [vmem:[%s3 + $0x60] sm:$0xff]
    %v152 = vld [vmem:[%s3 + $0x68] sm:$0xff]
    %v153 = vld [vmem:[%s3 + $0x70] sm:$0xff]
    %v154 = vld [vmem:[%s3 + $0x78] sm:$0xff]
    %v155 = vld [vmem:[%s3 + $0x80] sm:$0xff]
    %v156 = vld [vmem:[%s3 + $0x88] sm:$0xff]
    %v157 = vld [vmem:[%s3 + $0x90] sm:$0xff]
    %v158 = vld [vmem:[%s3 + $0x98] sm:$0xff]
    %v159 = vld [vmem:[%s3 + $0xa0] sm:$0xff]
    %v160 = vld [vmem:[%s3 + $0xa8] sm:$0xff]
    %v161 = vld [vmem:[%s3 + $0xb0] sm:$0xff]
    %v162 = vld [vmem:[%s3 + $0xb8] sm:$0xff]
    %v163 = vld [vmem:[%s3 + $0xc0] sm:$0xff]
    %v164 = vld [vmem:[%s3 + $0xc8] sm:$0xff]
    %v165 = vld [vmem:[%s3 + $0xd0] sm:$0xff]
    %v166 = vld [vmem:[%s3 + $0xd8] sm:$0xff]
    %v167 = vld [vmem:[%s3 + $0xe0] sm:$0xff]
    %v168 = vld [vmem:[%s3 + $0xe8] sm:$0xff]
    %v169 = vld [vmem:[%s3 + $0xf0] sm:$0xff]
    %v170 = vld [vmem:[%s3 + $0xf8] sm:$0xff]
    %v171 = vld [vmem:[%s4] sm:$0x1]
    %v173 = vlaneseq
    %v174 = vshrl.u32 %v173, 7
    %v175 = vsub.s32 0, %v174
    %v176 = vrot.slane %v171, %v175
    %178 = vmatprep.subr.mxu0 0.0
    %179 = vmatpush1.msra.mxu0 %v139
    %180 = vmatprep.subr.mxu0 0.0
    %181 = vmatpush1.msra.mxu0 %v140
    %182 = vmatprep.subr.mxu0 0.0
    %183 = vmatpush1.msra.mxu0 %v141
    %184 = vmatprep.subr.mxu0 0.0
    %185 = vmatpush1.msra.mxu0 %v142
    %186 = vmatprep.subr.mxu0 0.0
    %187 = vmatpush1.msra.mxu0 %v143
    %188 = vmatprep.subr.mxu0 0.0
    %189 = vmatpush1.msra.mxu0 %v144
    %190 = vmatprep.subr.mxu0 0.0
    %191 = vmatpush1.msra.mxu0 %v145
    %192 = vmatprep.subr.mxu0 0.0
    %193 = vmatpush1.msra.mxu0 %v146
    %194 = vmatprep.subr.mxu0 0.0
    %195 = vmatpush1.msra.mxu0 %v147
    %196 = vmatprep.subr.mxu0 0.0
    %197 = vmatpush1.msra.mxu0 %v148
    %198 = vmatprep.subr.mxu0 0.0
    %199 = vmatpush1.msra.mxu0 %v149
    %200 = vmatprep.subr.mxu0 0.0
    %201 = vmatpush1.msra.mxu0 %v150
    %202 = vmatprep.subr.mxu0 0.0
    %203 = vmatpush1.msra.mxu0 %v151
    %204 = vmatprep.subr.mxu0 0.0
    %205 = vmatpush1.msra.mxu0 %v152
    %206 = vmatprep.subr.mxu0 0.0
    %207 = vmatpush1.msra.mxu0 %v153
    %208 = vmatprep.subr.mxu0 0.0
    %209 = vmatpush1.msra.mxu0 %v154
    %210 = vmatprep.subr.mxu0 0.0
    %211 = vmatpush1.msra.mxu0 %v155
    %212 = vmatprep.subr.mxu0 0.0
    %213 = vmatpush1.msra.mxu0 %v156
    %214 = vmatprep.subr.mxu0 0.0
    %215 = vmatpush1.msra.mxu0 %v157
    %216 = vmatprep.subr.mxu0 0.0
    %217 = vmatpush1.msra.mxu0 %v158
    %218 = vmatprep.subr.mxu0 0.0
    %219 = vmatpush1.msra.mxu0 %v159
    %220 = vmatprep.subr.mxu0 0.0
    %221 = vmatpush1.msra.mxu0 %v160
    %222 = vmatprep.subr.mxu0 0.0
    %223 = vmatpush1.msra.mxu0 %v161
    %224 = vmatprep.subr.mxu0 0.0
    %225 = vmatpush1.msra.mxu0 %v162
    %226 = vmatprep.subr.mxu0 0.0
    %227 = vmatpush1.msra.mxu0 %v163
    %228 = vmatprep.subr.mxu0 0.0
    %229 = vmatpush1.msra.mxu0 %v164
    %230 = vmatprep.subr.mxu0 0.0
    %231 = vmatpush1.msra.mxu0 %v165
    %232 = vmatprep.subr.mxu0 0.0
    %233 = vmatpush1.msra.mxu0 %v166
    %234 = vmatprep.subr.mxu0 0.0
    %235 = vmatpush1.msra.mxu0 %v167
    %236 = vmatprep.subr.mxu0 0.0
    %237 = vmatpush1.msra.mxu0 %v168
    %238 = vmatprep.subr.mxu0 0.0
    %239 = vmatpush1.msra.mxu0 %v169
    %240 = vmatprep.subr.mxu0 0.0
    %241 = vmatpush1.msra.mxu0 %v170
    %242 = vmatprep.mubr.f32.mxu0 %v138
    %243 = vmatmul.mubr.f32.gmra.mrb[0].mxu0 %v137
    %v244 = vpop.f32.mrb[0].mxu0
    %v245 = vadd.f32 %v176, %v244
    %v246 = vpop.f32.mrb[0].mxu0
    %247 = vdwg.mxu0
    %vm248 = vcmask 386048
    %249 = vst.msk [vmem:[#allocation2] sm:$0x3] %vm248, %v245
    // Predicated region
    $region22: #{tpu_custom_call.1} parent=1 // pred_check
      _
    $region23: #{tpu_custom_call.1} parent=1 // pred_check_branch
      %251 = sbr.rel (0) target = $region25
    $region24: #{tpu_custom_call.1} parent=1 // pred_region
      %s253 = ssub.s32 32, 32
      %254 = vsyncadd [#allocation3], %s253
      %s256 = sshll.u32 [#allocation2], 4
      %s257 = int_to_ptr.vmem [resolvable:$true] %s256
      %259 = dma.vmem_to_hbm [thread:$0]  %s257, 32, %s5, [#allocation3]
    $region25: #{tpu_custom_call.1} parent=1 // pred_fallthru
      _
    // Predicated region
    $region26: #{tpu_custom_call.1} parent=1 // pred_check
      _
    $region27: #{tpu_custom_call.1} parent=1 // pred_check_branch
      %261 = sbr.rel (0) target = $region29
    $region28: #{tpu_custom_call.1} parent=1 // pred_region
      %262 = dma.done [#allocation3], 32
    $region29: #{tpu_custom_call.1} parent=1 // pred_fallthru
      _
    %263 = vsyncpa [#allocation3], 1

</llo_original>
